<compile_context>
chip_gen: v7x
topology: tpu7x:2x2x1
jax: 0.10.0
libtpu: 0.0.40
codegen_flags: <defaults>
</compile_context>

<pallas_src>
import jax
import jax.numpy as jnp
from jax.experimental import pallas as pl
from jax.experimental.pallas import tpu as pltpu


def cross_attention_kernel(x_ref, wall_ref, sdots_ref, gsum_ref, sexp_ref,
                           wout_ref, bout_ref, o_ref):
    # wall_ref: (N*DIM, 3*N*INNER) fused [K | V | Q_tiled] block weight.
    ni = wall_ref.shape[1] // 3                      # N * INNER

    x = x_ref[...]                                   # (B, N*DIM)  lane-dense
    kvq = jnp.dot(x, wall_ref[...],                  # (B, 3*N*INNER)
                  preferred_element_type=jnp.float32)
    kf = kvq[:, :ni]                                 # (B, N*INNER)  k, token-major
    vf = kvq[:, ni:2 * ni]                           # (B, N*INNER)  v, token-major
    qt = kvq[:, 2 * ni:]                             # (B, N*INNER)  scaled q tiled per token
    # all three slices start at multiples of 128 lanes -> whole-vreg selects.

    # dots[b, h*N + j] = sum_d k[b,j,h,d] * (q[b,h,d]*scale)   (MXU selector reduce)
    dots = jnp.dot(kf * qt, sdots_ref[...], preferred_element_type=jnp.float32)

    # Softmax over keys j within each head group.  Shifting by the per-row max
    # (constant within every group) is mathematically identical and avoids a
    # grouped sub-lane reduction.
    m = jnp.max(dots, axis=-1, keepdims=True)        # (B, 1)
    p = jnp.exp(dots - m)                            # (B, N*HEADS)
    denom = jnp.dot(p, gsum_ref[...],                # per-head sum, expanded back
                    preferred_element_type=jnp.float32)
    attn = p / denom                                 # exact (no approx reciprocal)

    # out[b, h*Dh + d] = sum_j attn[b,h,j] * v[b,j,h,d]; output projection folded
    # into wout_ref = tile(Wo^T) so the key-sum selector and Wo are one matmul.
    attn_exp = jnp.dot(attn, sexp_ref[...], preferred_element_type=jnp.float32)
    proj = jnp.dot(attn_exp * vf, wout_ref[...],
                   preferred_element_type=jnp.float32) + bout_ref[...]

    # Lane-dense store: o_ref may pack several batch rows per 128-lane row.
    o_ref[...] = proj.reshape(o_ref.shape).astype(o_ref.dtype)


def _build_selectors(n, heads, dim_head, dtype):
    inner = heads * dim_head
    # S: (N*INNER, N*HEADS), S[j*inner + h*dim_head + d, h*n + j] = 1
    rows = jnp.arange(n * inner)
    j = rows // inner
    h = (rows % inner) // dim_head
    s_dots = jax.nn.one_hot(h * n + j, n * heads, dtype=dtype)
    # G: (N*HEADS, N*HEADS), 1 where the two columns belong to the same head
    # (sum over keys + broadcast back, fused into one matmul).
    g_sum = jnp.kron(jnp.eye(heads, dtype=dtype), jnp.ones((n, n), dtype=dtype))
    # Expansion selector is just S^T.
    s_exp = s_dots.T
    return s_dots, g_sum, s_exp


def cross_attention(x, wk, wv, wq, wo, bo, *, heads, dim_head, b_blk=None):
    b, n, dim = x.shape
    inner = heads * dim_head
    assert wk.shape == (inner, dim) and wv.shape == (inner, dim) and wq.shape == (inner, dim)
    assert wo.shape == (dim, inner) and bo.shape == (dim,)
    dtype = x.dtype
    scale = dim_head ** -0.5

    # ---- one-time host-side layout / fusion work ---------------------------
    wk_t = wk.T.astype(dtype)                        # (DIM, INNER)
    wv_t = wv.T.astype(dtype)
    wq_t = (wq.T * scale).astype(dtype)              # softmax scale folded in
    eye_n = jnp.eye(n, dtype=dtype)
    bd_k = jnp.kron(eye_n, wk_t)                     # (N*DIM, N*INNER) block-diag
    bd_v = jnp.kron(eye_n, wv_t)
    # Q weight: only the first token contributes; output tiled across tokens so
    # the query broadcast comes directly out of the projection matmul.
    wq_tiled = jnp.concatenate(
        [jnp.tile(wq_t, (1, n)), jnp.zeros(((n - 1) * dim, n * inner), dtype)], axis=0)
    w_all = jnp.concatenate([bd_k, bd_v, wq_tiled], axis=1)       # (N*DIM, 3*N*INNER)

    s_dots, g_sum, s_exp = _build_selectors(n, heads, dim_head, dtype)
    # Fold the sum-over-keys selector into the output projection weight.
    w_out_big = jnp.tile(wo.T.astype(dtype), (n, 1))              # (N*INNER, DIM)
    bo2 = bo.reshape(1, dim).astype(dtype)

    # Lane-dense output packing: `pack` batch rows per 128-lane output row.
    pack = 1
    if dim < 128 and 128 % dim == 0 and b % (128 // dim) == 0:
        pack = 128 // dim

    # Grid policy: one fat step (single-TC chips pay pure overhead for splits).
    if b_blk is None:
        b_blk = b
    assert b % b_blk == 0 and b_blk % pack == 0
    assert b_blk == b or (b_blk // pack) % 8 == 0, "blocks must keep 8-sublane alignment"
    grid = (b // b_blk,)

    x_flat = x.reshape(b, n * dim)                   # free contiguous reshape

    out2d = pl.pallas_call(
        cross_attention_kernel,
        out_shape=jax.ShapeDtypeStruct((b // pack, pack * dim), dtype),
        grid=grid,
        in_specs=[
            pl.BlockSpec((b_blk, n * dim), lambda i: (i, 0)),          # x (lane-dense)
            pl.BlockSpec((n * dim, 3 * n * inner), lambda i: (0, 0)),  # fused KVQ weight
            pl.BlockSpec((n * inner, n * heads), lambda i: (0, 0)),    # dots selector
            pl.BlockSpec((n * heads, n * heads), lambda i: (0, 0)),    # key-sum/broadcast
            pl.BlockSpec((n * heads, n * inner), lambda i: (0, 0)),    # attn expansion
            pl.BlockSpec((n * inner, dim), lambda i: (0, 0)),          # folded out-proj
            pl.BlockSpec((1, dim), lambda i: (0, 0)),                  # bias
        ],
        out_specs=pl.BlockSpec((b_blk // pack, pack * dim), lambda i: (i, 0)),
        compiler_params=pltpu.CompilerParams(dimension_semantics=("arbitrary",)),
    )(x_flat, w_all, s_dots, g_sum, s_exp, w_out_big, bo2)

    return out2d.reshape(b, 1, dim)


def cross_attention_reference(x, wk, wv, wq, wo, bo, *, heads, dim_head):
    """Pure-JAX reference mirroring the PyTorch forward exactly."""
    b, n, dim = x.shape
    scale = dim_head ** -0.5
    k = x @ wk.T
    v = x @ wv.T
    q = x[:, 0:1, :] @ wq.T

    def split(t):
        bb, nn, _ = t.shape
        return t.reshape(bb, nn, heads, dim_head).transpose(0, 2, 1, 3)

    k, v, q = split(k), split(v), split(q)
    dots = jnp.einsum('bhid,bhjd->bhij', q, k) * scale
    attn = jax.nn.softmax(dots, axis=-1)
    out = jnp.einsum('bhij,bhjd->bhid', attn, v)
    out = out.transpose(0, 2, 1, 3).reshape(b, 1, heads * dim_head)
    return out @ wo.T + bo


if __name__ == "__main__":
    # Small shapes consistent with the module: dim=32, heads=4, dim_head=8.
    B, N, DIM = 2, 8, 32
    HEADS, DIM_HEAD = 4, 8
    INNER = HEADS * DIM_HEAD

    key = jax.random.PRNGKey(0)
    kx, kk, kv, kq, ko, kb = jax.random.split(key, 6)

    x = jax.random.normal(kx, (B, N, DIM), dtype=jnp.float32)
    # torch Linear layout: (out_features, in_features).
    wk = jax.random.normal(kk, (INNER, DIM), dtype=jnp.float32) * 0.1
    wv = jax.random.normal(kv, (INNER, DIM), dtype=jnp.float32) * 0.1
    wq = jax.random.normal(kq, (INNER, DIM), dtype=jnp.float32) * 0.1
    wo = jax.random.normal(ko, (DIM, INNER), dtype=jnp.float32) * 0.1
    bo = jax.random.normal(kb, (DIM,), dtype=jnp.float32) * 0.1

    out = cross_attention(x, wk, wv, wq, wo, bo, heads=HEADS, dim_head=DIM_HEAD)
    out = jax.block_until_ready(out)
    ref = cross_attention_reference(x, wk, wv, wq, wo, bo, heads=HEADS, dim_head=DIM_HEAD)
    assert out.shape == (B, 1, DIM)
    assert jnp.allclose(out, ref, atol=1e-3, rtol=1e-3), "mismatch vs reference (B=2)"

    # Larger batch: exercises the lane-dense packed output path (pack=4 -> (8,128)).
    B2 = 32
    x2 = jax.random.normal(jax.random.PRNGKey(1), (B2, N, DIM), dtype=jnp.float32)
    out2 = jax.block_until_ready(
        cross_attention(x2, wk, wv, wq, wo, bo, heads=HEADS, dim_head=DIM_HEAD))
    ref2 = cross_attention_reference(x2, wk, wv, wq, wo, bo, heads=HEADS, dim_head=DIM_HEAD)
    assert out2.shape == (B2, 1, DIM)
    assert jnp.allclose(out2, ref2, atol=1e-3, rtol=1e-3), "mismatch vs reference (B=32)"

    print("KERNEL_OK")
</pallas_src>

<mosaic_0001>
module attributes {stable_mosaic.version = 11 : i64} {
  func.func @cross_attention_kernel(%arg0: i32, %arg1: memref<2x256xf32, #tpu.memory_space<vmem>>, %arg2: memref<256x768xf32, #tpu.memory_space<vmem>>, %arg3: memref<256x32xf32, #tpu.memory_space<vmem>>, %arg4: memref<32x32xf32, #tpu.memory_space<vmem>>, %arg5: memref<32x256xf32, #tpu.memory_space<vmem>>, %arg6: memref<256x32xf32, #tpu.memory_space<vmem>>, %arg7: memref<1x32xf32, #tpu.memory_space<vmem>>, %arg8: memref<2x32xf32, #tpu.memory_space<vmem>>) attributes {dimension_semantics = [#tpu.dimension_semantics<arbitrary>], iteration_bounds = array<i64: 1>, scalar_prefetch = 0 : i64, scratch_operands = 0 : i64, tpu.core_type = #tpu.core_type<tc>, window_params = [{transform_indices = @transform_0, window_bounds = array<i64: 2, 256>}, {pipeline_mode = #tpu.pipeline_mode<synchronous>, transform_indices = @transform_1, window_bounds = array<i64: 256, 768>}, {pipeline_mode = #tpu.pipeline_mode<synchronous>, transform_indices = @transform_2, window_bounds = array<i64: 256, 32>}, {pipeline_mode = #tpu.pipeline_mode<synchronous>, transform_indices = @transform_3, window_bounds = array<i64: 32, 32>}, {pipeline_mode = #tpu.pipeline_mode<synchronous>, transform_indices = @transform_4, window_bounds = array<i64: 32, 256>}, {pipeline_mode = #tpu.pipeline_mode<synchronous>, transform_indices = @transform_5, window_bounds = array<i64: 256, 32>}, {pipeline_mode = #tpu.pipeline_mode<synchronous>, transform_indices = @transform_6, window_bounds = array<i64: 1, 32>}, {transform_indices = @transform_7, window_bounds = array<i64: 2, 32>}]} {
    %c0 = arith.constant 0 : index
    %c0_0 = arith.constant 0 : index
    %0 = vector.load %arg1[%c0, %c0_0] : memref<2x256xf32, #tpu.memory_space<vmem>>, vector<2x256xf32>
    %c0_1 = arith.constant 0 : index
    %c0_2 = arith.constant 0 : index
    %1 = vector.load %arg2[%c0_1, %c0_2] : memref<256x768xf32, #tpu.memory_space<vmem>>, vector<256x768xf32>
    %cst = arith.constant dense<0.000000e+00> : vector<2x768xf32>
    %2 = tpu.matmul %0, %1, %cst {dimension_numbers = #tpu.dot_dimension_numbers<[1], [0], [0], [1], [0, 0, 1, 1], [], []>} : vector<2x256xf32>, vector<256x768xf32>, vector<2x768xf32> -> vector<2x768xf32>
    %3 = vector.extract_strided_slice %2 {offsets = [0, 0], sizes = [2, 256], strides = [1, 1]} : vector<2x768xf32> to vector<2x256xf32>
    %4 = vector.extract_strided_slice %2 {offsets = [0, 256], sizes = [2, 256], strides = [1, 1]} : vector<2x768xf32> to vector<2x256xf32>
    %5 = vector.extract_strided_slice %2 {offsets = [0, 512], sizes = [2, 256], strides = [1, 1]} : vector<2x768xf32> to vector<2x256xf32>
    %6 = arith.mulf %3, %5 : vector<2x256xf32>
    %c0_3 = arith.constant 0 : index
    %c0_4 = arith.constant 0 : index
    %7 = vector.load %arg3[%c0_3, %c0_4] : memref<256x32xf32, #tpu.memory_space<vmem>>, vector<256x32xf32>
    %cst_5 = arith.constant dense<0.000000e+00> : vector<2x32xf32>
    %8 = tpu.matmul %6, %7, %cst_5 {dimension_numbers = #tpu.dot_dimension_numbers<[1], [0], [0], [1], [0, 0, 1, 1], [], []>} : vector<2x256xf32>, vector<256x32xf32>, vector<2x32xf32> -> vector<2x32xf32>
    %cst_6 = arith.constant dense<0xFF800000> : vector<2xf32>
    %9 = vector.multi_reduction <maximumf>, %8, %cst_6 [1] : vector<2x32xf32> to vector<2xf32>
    %10 = vector.shape_cast %9 : vector<2xf32> to vector<2x1xf32>
    %11 = vector.broadcast %10 : vector<2x1xf32> to vector<2x32xf32>
    %12 = arith.subf %8, %11 : vector<2x32xf32>
    %13 = math.exp %12 : vector<2x32xf32>
    %c0_7 = arith.constant 0 : index
    %c0_8 = arith.constant 0 : index
    %14 = vector.load %arg4[%c0_7, %c0_8] : memref<32x32xf32, #tpu.memory_space<vmem>>, vector<32x32xf32>
    %cst_9 = arith.constant dense<0.000000e+00> : vector<2x32xf32>
    %15 = tpu.matmul %13, %14, %cst_9 {dimension_numbers = #tpu.dot_dimension_numbers<[1], [0], [0], [1], [0, 0, 1, 1], [], []>} : vector<2x32xf32>, vector<32x32xf32>, vector<2x32xf32> -> vector<2x32xf32>
    %16 = arith.divf %13, %15 : vector<2x32xf32>
    %c0_10 = arith.constant 0 : index
    %c0_11 = arith.constant 0 : index
    %17 = vector.load %arg5[%c0_10, %c0_11] : memref<32x256xf32, #tpu.memory_space<vmem>>, vector<32x256xf32>
    %cst_12 = arith.constant dense<0.000000e+00> : vector<2x256xf32>
    %18 = tpu.matmul %16, %17, %cst_12 {dimension_numbers = #tpu.dot_dimension_numbers<[1], [0], [0], [1], [0, 0, 1, 1], [], []>} : vector<2x32xf32>, vector<32x256xf32>, vector<2x256xf32> -> vector<2x256xf32>
    %19 = arith.mulf %18, %4 : vector<2x256xf32>
    %c0_13 = arith.constant 0 : index
    %c0_14 = arith.constant 0 : index
    %20 = vector.load %arg6[%c0_13, %c0_14] : memref<256x32xf32, #tpu.memory_space<vmem>>, vector<256x32xf32>
    %cst_15 = arith.constant dense<0.000000e+00> : vector<2x32xf32>
    %21 = tpu.matmul %19, %20, %cst_15 {dimension_numbers = #tpu.dot_dimension_numbers<[1], [0], [0], [1], [0, 0, 1, 1], [], []>} : vector<2x256xf32>, vector<256x32xf32>, vector<2x32xf32> -> vector<2x32xf32>
    %c0_16 = arith.constant 0 : index
    %c0_17 = arith.constant 0 : index
    %22 = vector.load %arg7[%c0_16, %c0_17] : memref<1x32xf32, #tpu.memory_space<vmem>>, vector<1x32xf32>
    %23 = vector.broadcast %22 : vector<1x32xf32> to vector<2x32xf32>
    %24 = arith.addf %21, %23 : vector<2x32xf32>
    %c0_18 = arith.constant 0 : index
    %c0_19 = arith.constant 0 : index
    %25 = vector.load %arg8[%c0_18, %c0_19] : memref<2x32xf32, #tpu.memory_space<vmem>>, vector<2x32xf32>
    tpu.vector_store %arg8[%c0_18, %c0_19], %24 {strides = array<i32>} : memref<2x32xf32, #tpu.memory_space<vmem>>, vector<2x32xf32>,
    return
  }
  func.func @transform_0(%arg0: i32) -> (i32, i32) {
    %c0_i32 = arith.constant 0 : i32
    %c0_i32_0 = arith.constant 0 : i32
    return %arg0, %c0_i32 : i32, i32
  }
  func.func @transform_1(%arg0: i32) -> (i32, i32) {
    %c0_i32 = arith.constant 0 : i32
    %c0_i32_0 = arith.constant 0 : i32
    %c0_i32_1 = arith.constant 0 : i32
    return %c0_i32, %c0_i32_0 : i32, i32
  }
  func.func @transform_2(%arg0: i32) -> (i32, i32) {
    %c0_i32 = arith.constant 0 : i32
    %c0_i32_0 = arith.constant 0 : i32
    %c0_i32_1 = arith.constant 0 : i32
    return %c0_i32, %c0_i32_0 : i32, i32
  }
  func.func @transform_3(%arg0: i32) -> (i32, i32) {
    %c0_i32 = arith.constant 0 : i32
    %c0_i32_0 = arith.constant 0 : i32
    %c0_i32_1 = arith.constant 0 : i32
    return %c0_i32, %c0_i32_0 : i32, i32
  }
  func.func @transform_4(%arg0: i32) -> (i32, i32) {
    %c0_i32 = arith.constant 0 : i32
    %c0_i32_0 = arith.constant 0 : i32
    %c0_i32_1 = arith.constant 0 : i32
    return %c0_i32, %c0_i32_0 : i32, i32
  }
  func.func @transform_5(%arg0: i32) -> (i32, i32) {
    %c0_i32 = arith.constant 0 : i32
    %c0_i32_0 = arith.constant 0 : i32
    %c0_i32_1 = arith.constant 0 : i32
    return %c0_i32, %c0_i32_0 : i32, i32
  }
  func.func @transform_6(%arg0: i32) -> (i32, i32) {
    %c0_i32 = arith.constant 0 : i32
    %c0_i32_0 = arith.constant 0 : i32
    %c0_i32_1 = arith.constant 0 : i32
    return %c0_i32, %c0_i32_0 : i32, i32
  }
  func.func @transform_7(%arg0: i32) -> (i32, i32) {
    %c0_i32 = arith.constant 0 : i32
    %c0_i32_0 = arith.constant 0 : i32
    return %arg0, %c0_i32 : i32, i32
  }
}

</mosaic_0001>

<llo_original>
// kernel: tpu_custom_call.1
$region0: #{tpu_custom_call.1}
  #allocation0 [shape = 'u32[]', space=smem, size = 0x4, offset = 0x4, fixed_abs, tag = 'smem constant byte address 0x4 - core index']
  #allocation1 [shape = 'u32[144,128]{1,0:T(1,128)}', space=vmem, size = 0x12000, scoped, tag = 'internal scratch']
  %s0 = inlined_call_operand.vmem [shape: f32[2,256], index: 0, kind: input, shape index: {}]
  %s1 = inlined_call_operand.hbm [shape: f32[256,768], index: 1, kind: input, shape index: {}]
  %s2 = inlined_call_operand.vmem [shape: f32[256,32], index: 2, kind: input, shape index: {}]
  %s3 = inlined_call_operand.vmem [shape: f32[32,32], index: 3, kind: input, shape index: {}]
  %s4 = inlined_call_operand.vmem [shape: f32[32,256], index: 4, kind: input, shape index: {}]
  %s5 = inlined_call_operand.vmem [shape: f32[256,32], index: 5, kind: input, shape index: {}]
  %s6 = inlined_call_operand.vmem [shape: f32[1,32], index: 6, kind: input, shape index: {}]
  %s7 = inlined_call_operand.hbm [shape: f32[2,32], index: 7, kind: output, shape index: {}]
  %s8 = sld [smem:[#allocation0]]
  $region42: #{tpu_custom_call.1} parent=0
    _
  %s10 = ssub.s32 1, %s8
  %s11 = scalar_select 0, %s10, %s8
  $region1: #{tpu_custom_call.1} parent=0
    #allocation2 [shape = 'u8[786432]{0}', space=vmem, size = 0xc0000, scoped, tag = 'input window, operand 1, single buffered']
    #allocation3 [shape = 's32[1]{0}', space=sflag, size = 0x4, scoped, tag = 'scoped memory for tpu_custom_call.1']
    #allocation4 [shape = 's32[1]{0}', space=sflag, size = 0x4, scoped, tag = 'scoped memory for tpu_custom_call.1']
    #allocation5 [shape = 'u8[1024]{0}', space=vmem, size = 0x400, scoped, tag = 'output window, operand 0, single buffered']
    %12 = vsyncpa [#allocation3], 0
    %13 = vsyncpa [#allocation4], 0
    // Predicated region
    $region2: #{tpu_custom_call.1} parent=1 // pred_check
      _
    $region3: #{tpu_custom_call.1} parent=1 // pred_check_branch
      %15 = sbr.rel (0) target = $region5
    $region4: #{tpu_custom_call.1} parent=1 // pred_region
      _
    $region5: #{tpu_custom_call.1} parent=1 // pred_fallthru
      _
    // Predicated region
    $region6: #{tpu_custom_call.1} parent=1 // pred_check
      _
    $region7: #{tpu_custom_call.1} parent=1 // pred_check_branch
      %17 = sbr.rel (0) target = $region9
    $region8: #{tpu_custom_call.1} parent=1 // pred_region
      %s19 = ssub.s32 24576, 24576
      %20 = vsyncadd [#allocation3], %s19
      %s21 = sshll.u32 [#allocation2], 4
      %s22 = int_to_ptr.vmem [resolvable:$true] %s21
      %27 = dma.hbm_to_vmem [thread:$0]  %s1, 24576, %s22, [#allocation3], 768, 768, 48
    $region9: #{tpu_custom_call.1} parent=1 // pred_fallthru
      _
    // Predicated region
    $region10: #{tpu_custom_call.1} parent=1 // pred_check
      _
    $region11: #{tpu_custom_call.1} parent=1 // pred_check_branch
      %29 = sbr.rel (0) target = $region13
    $region12: #{tpu_custom_call.1} parent=1 // pred_region
      _
    $region13: #{tpu_custom_call.1} parent=1 // pred_fallthru
      _
    // Predicated region
    $region14: #{tpu_custom_call.1} parent=1 // pred_check
      _
    $region15: #{tpu_custom_call.1} parent=1 // pred_check_branch
      %31 = sbr.rel (0) target = $region17
    $region16: #{tpu_custom_call.1} parent=1 // pred_region
      _
    $region17: #{tpu_custom_call.1} parent=1 // pred_fallthru
      _
    // Predicated region
    $region18: #{tpu_custom_call.1} parent=1 // pred_check
      _
    $region19: #{tpu_custom_call.1} parent=1 // pred_check_branch
      %33 = sbr.rel (0) target = $region21
    $region20: #{tpu_custom_call.1} parent=1 // pred_region
      _
    $region21: #{tpu_custom_call.1} parent=1 // pred_fallthru
      _
    // Predicated region
    $region22: #{tpu_custom_call.1} parent=1 // pred_check
      _
    $region23: #{tpu_custom_call.1} parent=1 // pred_check_branch
      %35 = sbr.rel (0) target = $region25
    $region24: #{tpu_custom_call.1} parent=1 // pred_region
      _
    $region25: #{tpu_custom_call.1} parent=1 // pred_fallthru
      _
    // Predicated region
    $region26: #{tpu_custom_call.1} parent=1 // pred_check
      _
    $region27: #{tpu_custom_call.1} parent=1 // pred_check_branch
      %37 = sbr.rel (0) target = $region29
    $region28: #{tpu_custom_call.1} parent=1 // pred_region
      _
    $region29: #{tpu_custom_call.1} parent=1 // pred_fallthru
      _
    // Predicated region
    $region30: #{tpu_custom_call.1} parent=1 // pred_check
      _
    $region31: #{tpu_custom_call.1} parent=1 // pred_check_branch
      %39 = sbr.rel (0) target = $region33
    $region32: #{tpu_custom_call.1} parent=1 // pred_region
      %40 = dma.done [#allocation3], 24576
    $region33: #{tpu_custom_call.1} parent=1 // pred_fallthru
      _
    %v41 = vld [vmem:[%s0] sm:$0xf]
    %v42 = vld [vmem:[#allocation2] sm:$0xff]
    %v43 = vld [vmem:[#allocation2 + $0x8] sm:$0xff]
    %v44 = vld [vmem:[#allocation2 + $0x10] sm:$0xff]
    %v45 = vld [vmem:[#allocation2 + $0x18] sm:$0xff]
    %v46 = vld [vmem:[#allocation2 + $0x20] sm:$0xff]
    %v47 = vld [vmem:[#allocation2 + $0x28] sm:$0xff]
    %v48 = vld [vmem:[#allocation2 + $0x30] sm:$0xff]
    %v49 = vld [vmem:[#allocation2 + $0x38] sm:$0xff]
    %v50 = vld [vmem:[#allocation2 + $0x40] sm:$0xff]
    %v51 = vld [vmem:[#allocation2 + $0x48] sm:$0xff]
    %v52 = vld [vmem:[#allocation2 + $0x50] sm:$0xff]
    %v53 = vld [vmem:[#allocation2 + $0x58] sm:$0xff]
    %v54 = vld [vmem:[#allocation2 + $0x60] sm:$0xff]
    %v55 = vld [vmem:[#allocation2 + $0x68] sm:$0xff]
    %v56 = vld [vmem:[#allocation2 + $0x70] sm:$0xff]
    %v57 = vld [vmem:[#allocation2 + $0x78] sm:$0xff]
    %v58 = vld [vmem:[#allocation2 + $0x80] sm:$0xff]
    %v59 = vld [vmem:[#allocation2 + $0x88] sm:$0xff]
    %v60 = vld [vmem:[#allocation2 + $0x90] sm:$0xff]
    %v61 = vld [vmem:[#allocation2 + $0x98] sm:$0xff]
    %v62 = vld [vmem:[#allocation2 + $0xa0] sm:$0xff]
    %v63 = vld [vmem:[#allocation2 + $0xa8] sm:$0xff]
    %v64 = vld [vmem:[#allocation2 + $0xb0] sm:$0xff]
    %v65 = vld [vmem:[#allocation2 + $0xb8] sm:$0xff]
    %v66 = vld [vmem:[#allocation2 + $0xc0] sm:$0xff]
    %v67 = vld [vmem:[#allocation2 + $0xc8] sm:$0xff]
    %v68 = vld [vmem:[#allocation2 + $0xd0] sm:$0xff]
    %v69 = vld [vmem:[#allocation2 + $0xd8] sm:$0xff]
    %v70 = vld [vmem:[#allocation2 + $0xe0] sm:$0xff]
    %v71 = vld [vmem:[#allocation2 + $0xe8] sm:$0xff]
    %v72 = vld [vmem:[#allocation2 + $0xf0] sm:$0xff]
    %v73 = vld [vmem:[#allocation2 + $0xf8] sm:$0xff]
    %v74 = vld [vmem:[#allocation2 + $0x100] sm:$0xff]
    %v75 = vld [vmem:[#allocation2 + $0x108] sm:$0xff]
    %v76 = vld [vmem:[#allocation2 + $0x110] sm:$0xff]
    %v77 = vld [vmem:[#allocation2 + $0x118] sm:$0xff]
    %v78 = vld [vmem:[#allocation2 + $0x120] sm:$0xff]
    %v79 = vld [vmem:[#allocation2 + $0x128] sm:$0xff]
    %v80 = vld [vmem:[#allocation2 + $0x130] sm:$0xff]
    %v81 = vld [vmem:[#allocation2 + $0x138] sm:$0xff]
    %v82 = vld [vmem:[#allocation2 + $0x140] sm:$0xff]
    %v83 = vld [vmem:[#allocation2 + $0x148] sm:$0xff]
    %v84 = vld [vmem:[#allocation2 + $0x150] sm:$0xff]
    %v85 = vld [vmem:[#allocation2 + $0x158] sm:$0xff]
    %v86 = vld [vmem:[#allocation2 + $0x160] sm:$0xff]
    %v87 = vld [vmem:[#allocation2 + $0x168] sm:$0xff]
    %v88 = vld [vmem:[#allocation2 + $0x170] sm:$0xff]
    %v89 = vld [vmem:[#allocation2 + $0x178] sm:$0xff]
    %v90 = vld [vmem:[#allocation2 + $0x180] sm:$0xff]
    %v91 = vld [vmem:[#allocation2 + $0x188] sm:$0xff]
    %v92 = vld [vmem:[#allocation2 + $0x190] sm:$0xff]
    %v93 = vld [vmem:[#allocation2 + $0x198] sm:$0xff]
    %v94 = vld [vmem:[#allocation2 + $0x1a0] sm:$0xff]
    %v95 = vld [vmem:[#allocation2 + $0x1a8] sm:$0xff]
    %v96 = vld [vmem:[#allocation2 + $0x1b0] sm:$0xff]
    %v97 = vld [vmem:[#allocation2 + $0x1b8] sm:$0xff]
    %v98 = vld [vmem:[#allocation2 + $0x1c0] sm:$0xff]
    %v99 = vld [vmem:[#allocation2 + $0x1c8] sm:$0xff]
    %v100 = vld [vmem:[#allocation2 + $0x1d0] sm:$0xff]
    %v101 = vld [vmem:[#allocation2 + $0x1d8] sm:$0xff]
    %v102 = vld [vmem:[#allocation2 + $0x1e0] sm:$0xff]
    %v103 = vld [vmem:[#allocation2 + $0x1e8] sm:$0xff]
    %v104 = vld [vmem:[#allocation2 + $0x1f0] sm:$0xff]
    %v105 = vld [vmem:[#allocation2 + $0x1f8] sm:$0xff]
    %v106 = vld [vmem:[#allocation2 + $0x200] sm:$0xff]
    %v107 = vld [vmem:[#allocation2 + $0x208] sm:$0xff]
    %v108 = vld [vmem:[#allocation2 + $0x210] sm:$0xff]
    %v109 = vld [vmem:[#allocation2 + $0x218] sm:$0xff]
    %v110 = vld [vmem:[#allocation2 + $0x220] sm:$0xff]
    %v111 = vld [vmem:[#allocation2 + $0x228] sm:$0xff]
    %v112 = vld [vmem:[#allocation2 + $0x230] sm:$0xff]
    %v113 = vld [vmem:[#allocation2 + $0x238] sm:$0xff]
    %v114 = vld [vmem:[#allocation2 + $0x240] sm:$0xff]
    %v115 = vld [vmem:[#allocation2 + $0x248] sm:$0xff]
    %v116 = vld [vmem:[#allocation2 + $0x250] sm:$0xff]
    %v117 = vld [vmem:[#allocation2 + $0x258] sm:$0xff]
    %v118 = vld [vmem:[#allocation2 + $0x260] sm:$0xff]
    %v119 = vld [vmem:[#allocation2 + $0x268] sm:$0xff]
    %v120 = vld [vmem:[#allocation2 + $0x270] sm:$0xff]
    %v121 = vld [vmem:[#allocation2 + $0x278] sm:$0xff]
    %v122 = vld [vmem:[#allocation2 + $0x280] sm:$0xff]
    %v123 = vld [vmem:[#allocation2 + $0x288] sm:$0xff]
    %v124 = vld [vmem:[#allocation2 + $0x290] sm:$0xff]
    %v125 = vld [vmem:[#allocation2 + $0x298] sm:$0xff]
    %v126 = vld [vmem:[#allocation2 + $0x2a0] sm:$0xff]
    %v127 = vld [vmem:[#allocation2 + $0x2a8] sm:$0xff]
    %v128 = vld [vmem:[#allocation2 + $0x2b0] sm:$0xff]
    %v129 = vld [vmem:[#allocation2 + $0x2b8] sm:$0xff]
    %v130 = vld [vmem:[#allocation2 + $0x2c0] sm:$0xff]
    %v131 = vld [vmem:[#allocation2 + $0x2c8] sm:$0xff]
    %v132 = vld [vmem:[#allocation2 + $0x2d0] sm:$0xff]
    %v133 = vld [vmem:[#allocation2 + $0x2d8] sm:$0xff]
    %v134 = vld [vmem:[#allocation2 + $0x2e0] sm:$0xff]
    %v135 = vld [vmem:[#allocation2 + $0x2e8] sm:$0xff]
    %v136 = vld [vmem:[#allocation2 + $0x2f0] sm:$0xff]
    %v137 = vld [vmem:[#allocation2 + $0x2f8] sm:$0xff]
    %v138 = vld [vmem:[#allocation2 + $0x300] sm:$0xff]
    %v139 = vld [vmem:[#allocation2 + $0x308] sm:$0xff]
    %v140 = vld [vmem:[#allocation2 + $0x310] sm:$0xff]
    %v141 = vld [vmem:[#allocation2 + $0x318] sm:$0xff]
    %v142 = vld [vmem:[#allocation2 + $0x320] sm:$0xff]
    %v143 = vld [vmem:[#allocation2 + $0x328] sm:$0xff]
    %v144 = vld [vmem:[#allocation2 + $0x330] sm:$0xff]
    %v145 = vld [vmem:[#allocation2 + $0x338] sm:$0xff]
    %v146 = vld [vmem:[#allocation2 + $0x340] sm:$0xff]
    %v147 = vld [vmem:[#allocation2 + $0x348] sm:$0xff]
    %v148 = vld [vmem:[#allocation2 + $0x350] sm:$0xff]
    %v149 = vld [vmem:[#allocation2 + $0x358] sm:$0xff]
    %v150 = vld [vmem:[#allocation2 + $0x360] sm:$0xff]
    %v151 = vld [vmem:[#allocation2 + $0x368] sm:$0xff]
    %v152 = vld [vmem:[#allocation2 + $0x370] sm:$0xff]
    %v153 = vld [vmem:[#allocation2 + $0x378] sm:$0xff]
    %v154 = vld [vmem:[#allocation2 + $0x380] sm:$0xff]
    %v155 = vld [vmem:[#allocation2 + $0x388] sm:$0xff]
    %v156 = vld [vmem:[#allocation2 + $0x390] sm:$0xff]
    %v157 = vld [vmem:[#allocation2 + $0x398] sm:$0xff]
    %v158 = vld [vmem:[#allocation2 + $0x3a0] sm:$0xff]
    %v159 = vld [vmem:[#allocation2 + $0x3a8] sm:$0xff]
    %v160 = vld [vmem:[#allocation2 + $0x3b0] sm:$0xff]
    %v161 = vld [vmem:[#allocation2 + $0x3b8] sm:$0xff]
    %v162 = vld [vmem:[#allocation2 + $0x3c0] sm:$0xff]
    %v163 = vld [vmem:[#allocation2 + $0x3c8] sm:$0xff]
    %v164 = vld [vmem:[#allocation2 + $0x3d0] sm:$0xff]
    %v165 = vld [vmem:[#allocation2 + $0x3d8] sm:$0xff]
    %v166 = vld [vmem:[#allocation2 + $0x3e0] sm:$0xff]
    %v167 = vld [vmem:[#allocation2 + $0x3e8] sm:$0xff]
    %v168 = vld [vmem:[#allocation2 + $0x3f0] sm:$0xff]
    %v169 = vld [vmem:[#allocation2 + $0x3f8] sm:$0xff]
    %v170 = vld [vmem:[#allocation2 + $0x400] sm:$0xff]
    %v171 = vld [vmem:[#allocation2 + $0x408] sm:$0xff]
    %v172 = vld [vmem:[#allocation2 + $0x410] sm:$0xff]
    %v173 = vld [vmem:[#allocation2 + $0x418] sm:$0xff]
    %v174 = vld [vmem:[#allocation2 + $0x420] sm:$0xff]
    %v175 = vld [vmem:[#allocation2 + $0x428] sm:$0xff]
    %v176 = vld [vmem:[#allocation2 + $0x430] sm:$0xff]
    %v177 = vld [vmem:[#allocation2 + $0x438] sm:$0xff]
    %v178 = vld [vmem:[#allocation2 + $0x440] sm:$0xff]
    %v179 = vld [vmem:[#allocation2 + $0x448] sm:$0xff]
    %v180 = vld [vmem:[#allocation2 + $0x450] sm:$0xff]
    %v181 = vld [vmem:[#allocation2 + $0x458] sm:$0xff]
    %v182 = vld [vmem:[#allocation2 + $0x460] sm:$0xff]
    %v183 = vld [vmem:[#allocation2 + $0x468] sm:$0xff]
    %v184 = vld [vmem:[#allocation2 + $0x470] sm:$0xff]
    %v185 = vld [vmem:[#allocation2 + $0x478] sm:$0xff]
    %v186 = vld [vmem:[#allocation2 + $0x480] sm:$0xff]
    %v187 = vld [vmem:[#allocation2 + $0x488] sm:$0xff]
    %v188 = vld [vmem:[#allocation2 + $0x490] sm:$0xff]
    %v189 = vld [vmem:[#allocation2 + $0x498] sm:$0xff]
    %v190 = vld [vmem:[#allocation2 + $0x4a0] sm:$0xff]
    %v191 = vld [vmem:[#allocation2 + $0x4a8] sm:$0xff]
    %v192 = vld [vmem:[#allocation2 + $0x4b0] sm:$0xff]
    %v193 = vld [vmem:[#allocation2 + $0x4b8] sm:$0xff]
    %v194 = vld [vmem:[#allocation2 + $0x4c0] sm:$0xff]
    %v195 = vld [vmem:[#allocation2 + $0x4c8] sm:$0xff]
    %v196 = vld [vmem:[#allocation2 + $0x4d0] sm:$0xff]
    %v197 = vld [vmem:[#allocation2 + $0x4d8] sm:$0xff]
    %v198 = vld [vmem:[#allocation2 + $0x4e0] sm:$0xff]
    %v199 = vld [vmem:[#allocation2 + $0x4e8] sm:$0xff]
    %v200 = vld [vmem:[#allocation2 + $0x4f0] sm:$0xff]
    %v201 = vld [vmem:[#allocation2 + $0x4f8] sm:$0xff]
    %v202 = vld [vmem:[#allocation2 + $0x500] sm:$0xff]
    %v203 = vld [vmem:[#allocation2 + $0x508] sm:$0xff]
    %v204 = vld [vmem:[#allocation2 + $0x510] sm:$0xff]
    %v205 = vld [vmem:[#allocation2 + $0x518] sm:$0xff]
    %v206 = vld [vmem:[#allocation2 + $0x520] sm:$0xff]
    %v207 = vld [vmem:[#allocation2 + $0x528] sm:$0xff]
    %v208 = vld [vmem:[#allocation2 + $0x530] sm:$0xff]
    %v209 = vld [vmem:[#allocation2 + $0x538] sm:$0xff]
    %v210 = vld [vmem:[#allocation2 + $0x540] sm:$0xff]
    %v211 = vld [vmem:[#allocation2 + $0x548] sm:$0xff]
    %v212 = vld [vmem:[#allocation2 + $0x550] sm:$0xff]
    %v213 = vld [vmem:[#allocation2 + $0x558] sm:$0xff]
    %v214 = vld [vmem:[#allocation2 + $0x560] sm:$0xff]
    %v215 = vld [vmem:[#allocation2 + $0x568] sm:$0xff]
    %v216 = vld [vmem:[#allocation2 + $0x570] sm:$0xff]
    %v217 = vld [vmem:[#allocation2 + $0x578] sm:$0xff]
    %v218 = vld [vmem:[#allocation2 + $0x580] sm:$0xff]
    %v219 = vld [vmem:[#allocation2 + $0x588] sm:$0xff]
    %v220 = vld [vmem:[#allocation2 + $0x590] sm:$0xff]
    %v221 = vld [vmem:[#allocation2 + $0x598] sm:$0xff]
    %v222 = vld [vmem:[#allocation2 + $0x5a0] sm:$0xff]
    %v223 = vld [vmem:[#allocation2 + $0x5a8] sm:$0xff]
    %v224 = vld [vmem:[#allocation2 + $0x5b0] sm:$0xff]
    %v225 = vld [vmem:[#allocation2 + $0x5b8] sm:$0xff]
    %v226 = vld [vmem:[#allocation2 + $0x5c0] sm:$0xff]
    %v227 = vld [vmem:[#allocation2 + $0x5c8] sm:$0xff]
    %v228 = vld [vmem:[#allocation2 + $0x5d0] sm:$0xff]
    %v229 = vld [vmem:[#allocation2 + $0x5d8] sm:$0xff]
    %v230 = vld [vmem:[#allocation2 + $0x5e0] sm:$0xff]
    %v231 = vld [vmem:[#allocation2 + $0x5e8] sm:$0xff]
    %v232 = vld [vmem:[#allocation2 + $0x5f0] sm:$0xff]
    %v233 = vld [vmem:[#allocation2 + $0x5f8] sm:$0xff]
    %v236 = vunpack.c.l.s4 1983009808
    %v237 = vunpack.c.0.s8 %v236
    %v238 = vlaneseq
    %v239 = vshrl.u32 %v238, 7
    %v240 = vsub.s32 %v237, %v239
    %v241 = vrot.slane %v41, %v240
    %v242 = vcombine.high %v241, %v241
    %245 = vmatprep.subr.mxu0 %v43
    %246 = vmatpush1.msra.mxu0 %v42
    %247 = vmatprep.subr.mxu0 %v49
    %248 = vmatpush1.msra.mxu0 %v48
    %249 = vmatprep.subr.mxu0 %v55
    %250 = vmatpush1.msra.mxu0 %v54
    %251 = vmatprep.subr.mxu0 %v61
    %252 = vmatpush1.msra.mxu0 %v60
    %253 = vmatprep.subr.mxu0 %v67
    %254 = vmatpush1.msra.mxu0 %v66
    %255 = vmatprep.subr.mxu0 %v73
    %256 = vmatpush1.msra.mxu0 %v72
    %257 = vmatprep.subr.mxu0 %v79
    %258 = vmatpush1.msra.mxu0 %v78
    %259 = vmatprep.subr.mxu0 %v85
    %260 = vmatpush1.msra.mxu0 %v84
    %261 = vmatprep.subr.mxu0 %v91
    %262 = vmatpush1.msra.mxu0 %v90
    %263 = vmatprep.subr.mxu0 %v97
    %264 = vmatpush1.msra.mxu0 %v96
    %265 = vmatprep.subr.mxu0 %v103
    %266 = vmatpush1.msra.mxu0 %v102
    %267 = vmatprep.subr.mxu0 %v109
    %268 = vmatpush1.msra.mxu0 %v108
    %269 = vmatprep.subr.mxu0 %v115
    %270 = vmatpush1.msra.mxu0 %v114
    %271 = vmatprep.subr.mxu0 %v121
    %272 = vmatpush1.msra.mxu0 %v120
    %273 = vmatprep.subr.mxu0 %v127
    %274 = vmatpush1.msra.mxu0 %v126
    %275 = vmatprep.subr.mxu0 %v133
    %276 = vmatpush1.msra.mxu0 %v132
    %277 = vmatprep.subr.mxu0 %v139
    %278 = vmatpush1.msra.mxu0 %v138
    %279 = vmatprep.subr.mxu0 %v145
    %280 = vmatpush1.msra.mxu0 %v144
    %281 = vmatprep.subr.mxu0 %v151
    %282 = vmatpush1.msra.mxu0 %v150
    %283 = vmatprep.subr.mxu0 %v157
    %284 = vmatpush1.msra.mxu0 %v156
    %285 = vmatprep.subr.mxu0 %v163
    %286 = vmatpush1.msra.mxu0 %v162
    %287 = vmatprep.subr.mxu0 %v169
    %288 = vmatpush1.msra.mxu0 %v168
    %289 = vmatprep.subr.mxu0 %v175
    %290 = vmatpush1.msra.mxu0 %v174
    %291 = vmatprep.subr.mxu0 %v181
    %292 = vmatpush1.msra.mxu0 %v180
    %293 = vmatprep.subr.mxu0 %v187
    %294 = vmatpush1.msra.mxu0 %v186
    %295 = vmatprep.subr.mxu0 %v193
    %296 = vmatpush1.msra.mxu0 %v192
    %297 = vmatprep.subr.mxu0 %v199
    %298 = vmatpush1.msra.mxu0 %v198
    %299 = vmatprep.subr.mxu0 %v205
    %300 = vmatpush1.msra.mxu0 %v204
    %301 = vmatprep.subr.mxu0 %v211
    %302 = vmatpush1.msra.mxu0 %v210
    %303 = vmatprep.subr.mxu0 %v217
    %304 = vmatpush1.msra.mxu0 %v216
    %305 = vmatprep.subr.mxu0 %v223
    %306 = vmatpush1.msra.mxu0 %v222
    %307 = vmatprep.subr.mxu0 %v229
    %308 = vmatpush1.msra.mxu0 %v228
    %309 = vmatprep.mubr.f32.mxu0 %v242
    %310 = vmatmul.mubr.f32.gmra.mrb[0].mxu0 %v241
    %v311 = vpop.f32.mrb[0].mxu0
    %v312 = vadd.f32 0.0, %v311
    %v313 = vpop.f32.mrb[0].mxu0
    %v314 = vadd.f32 0.0, %v313
    %315 = vdwg.mxu0
    %316 = vmatprep.subr.mxu0 %v45
    %317 = vmatpush1.msra.mxu0 %v44
    %318 = vmatprep.subr.mxu0 %v51
    %319 = vmatpush1.msra.mxu0 %v50
    %320 = vmatprep.subr.mxu0 %v57
    %321 = vmatpush1.msra.mxu0 %v56
    %322 = vmatprep.subr.mxu0 %v63
    %323 = vmatpush1.msra.mxu0 %v62
    %324 = vmatprep.subr.mxu0 %v69
    %325 = vmatpush1.msra.mxu0 %v68
    %326 = vmatprep.subr.mxu0 %v75
    %327 = vmatpush1.msra.mxu0 %v74
    %328 = vmatprep.subr.mxu0 %v81
    %329 = vmatpush1.msra.mxu0 %v80
    %330 = vmatprep.subr.mxu0 %v87
    %331 = vmatpush1.msra.mxu0 %v86
    %332 = vmatprep.subr.mxu0 %v93
    %333 = vmatpush1.msra.mxu0 %v92
    %334 = vmatprep.subr.mxu0 %v99
    %335 = vmatpush1.msra.mxu0 %v98
    %336 = vmatprep.subr.mxu0 %v105
    %337 = vmatpush1.msra.mxu0 %v104
    %338 = vmatprep.subr.mxu0 %v111
    %339 = vmatpush1.msra.mxu0 %v110
    %340 = vmatprep.subr.mxu0 %v117
    %341 = vmatpush1.msra.mxu0 %v116
    %342 = vmatprep.subr.mxu0 %v123
    %343 = vmatpush1.msra.mxu0 %v122
    %344 = vmatprep.subr.mxu0 %v129
    %345 = vmatpush1.msra.mxu0 %v128
    %346 = vmatprep.subr.mxu0 %v135
    %347 = vmatpush1.msra.mxu0 %v134
    %348 = vmatprep.subr.mxu0 %v141
    %349 = vmatpush1.msra.mxu0 %v140
    %350 = vmatprep.subr.mxu0 %v147
    %351 = vmatpush1.msra.mxu0 %v146
    %352 = vmatprep.subr.mxu0 %v153
    %353 = vmatpush1.msra.mxu0 %v152
    %354 = vmatprep.subr.mxu0 %v159
    %355 = vmatpush1.msra.mxu0 %v158
    %356 = vmatprep.subr.mxu0 %v165
    %357 = vmatpush1.msra.mxu0 %v164
    %358 = vmatprep.subr.mxu0 %v171
    %359 = vmatpush1.msra.mxu0 %v170
    %360 = vmatprep.subr.mxu0 %v177
    %361 = vmatpush1.msra.mxu0 %v176
    %362 = vmatprep.subr.mxu0 %v183
    %363 = vmatpush1.msra.mxu0 %v182
    %364 = vmatprep.subr.mxu0 %v189
    %365 = vmatpush1.msra.mxu0 %v188
    %366 = vmatprep.subr.mxu0 %v195
    %367 = vmatpush1.msra.mxu0 %v194
    %368 = vmatprep.subr.mxu0 %v201
    %369 = vmatpush1.msra.mxu0 %v200
    %370 = vmatprep.subr.mxu0 %v207
    %371 = vmatpush1.msra.mxu0 %v206
    %372 = vmatprep.subr.mxu0 %v213
    %373 = vmatpush1.msra.mxu0 %v212
    %374 = vmatprep.subr.mxu0 %v219
    %375 = vmatpush1.msra.mxu0 %v218
    %376 = vmatprep.subr.mxu0 %v225
    %377 = vmatpush1.msra.mxu0 %v224
    %378 = vmatprep.subr.mxu0 %v231
    %379 = vmatpush1.msra.mxu0 %v230
    %380 = vmatprep.mubr.f32.mxu0 %v242
    %381 = vmatmul.mubr.f32.gmra.mrb[0].mxu0 %v241
    %v382 = vpop.f32.mrb[0].mxu0
    %v383 = vadd.f32 0.0, %v382
    %v384 = vpop.f32.mrb[0].mxu0
    %v385 = vadd.f32 0.0, %v384
    %386 = vdwg.mxu0
    %387 = vmatprep.subr.mxu0 %v47
    %388 = vmatpush1.msra.mxu0 %v46
    %389 = vmatprep.subr.mxu0 %v53
    %390 = vmatpush1.msra.mxu0 %v52
    %391 = vmatprep.subr.mxu0 %v59
    %392 = vmatpush1.msra.mxu0 %v58
    %393 = vmatprep.subr.mxu0 %v65
    %394 = vmatpush1.msra.mxu0 %v64
    %395 = vmatprep.subr.mxu0 %v71
    %396 = vmatpush1.msra.mxu0 %v70
    %397 = vmatprep.subr.mxu0 %v77
    %398 = vmatpush1.msra.mxu0 %v76
    %399 = vmatprep.subr.mxu0 %v83
    %400 = vmatpush1.msra.mxu0 %v82
    %401 = vmatprep.subr.mxu0 %v89
    %402 = vmatpush1.msra.mxu0 %v88
    %403 = vmatprep.subr.mxu0 %v95
    %404 = vmatpush1.msra.mxu0 %v94
    %405 = vmatprep.subr.mxu0 %v101
    %406 = vmatpush1.msra.mxu0 %v100
    %407 = vmatprep.subr.mxu0 %v107
    %408 = vmatpush1.msra.mxu0 %v106
    %409 = vmatprep.subr.mxu0 %v113
    %410 = vmatpush1.msra.mxu0 %v112
    %411 = vmatprep.subr.mxu0 %v119
    %412 = vmatpush1.msra.mxu0 %v118
    %413 = vmatprep.subr.mxu0 %v125
    %414 = vmatpush1.msra.mxu0 %v124
    %415 = vmatprep.subr.mxu0 %v131
    %416 = vmatpush1.msra.mxu0 %v130
    %417 = vmatprep.subr.mxu0 %v137
    %418 = vmatpush1.msra.mxu0 %v136
    %419 = vmatprep.subr.mxu0 %v143
    %420 = vmatpush1.msra.mxu0 %v142
    %421 = vmatprep.subr.mxu0 %v149
    %422 = vmatpush1.msra.mxu0 %v148
    %423 = vmatprep.subr.mxu0 %v155
    %424 = vmatpush1.msra.mxu0 %v154
    %425 = vmatprep.subr.mxu0 %v161
    %426 = vmatpush1.msra.mxu0 %v160
    %427 = vmatprep.subr.mxu0 %v167
    %428 = vmatpush1.msra.mxu0 %v166
    %429 = vmatprep.subr.mxu0 %v173
    %430 = vmatpush1.msra.mxu0 %v172
    %431 = vmatprep.subr.mxu0 %v179
    %432 = vmatpush1.msra.mxu0 %v178
    %433 = vmatprep.subr.mxu0 %v185
    %434 = vmatpush1.msra.mxu0 %v184
    %435 = vmatprep.subr.mxu0 %v191
    %436 = vmatpush1.msra.mxu0 %v190
    %437 = vmatprep.subr.mxu0 %v197
    %438 = vmatpush1.msra.mxu0 %v196
    %439 = vmatprep.subr.mxu0 %v203
    %440 = vmatpush1.msra.mxu0 %v202
    %441 = vmatprep.subr.mxu0 %v209
    %442 = vmatpush1.msra.mxu0 %v208
    %443 = vmatprep.subr.mxu0 %v215
    %444 = vmatpush1.msra.mxu0 %v214
    %445 = vmatprep.subr.mxu0 %v221
    %446 = vmatpush1.msra.mxu0 %v220
    %447 = vmatprep.subr.mxu0 %v227
    %448 = vmatpush1.msra.mxu0 %v226
    %449 = vmatprep.subr.mxu0 %v233
    %450 = vmatpush1.msra.mxu0 %v232
    %451 = vmatprep.mubr.f32.mxu0 %v242
    %452 = vmatmul.mubr.f32.gmra.mrb[0].mxu0 %v241
    %v453 = vpop.f32.mrb[0].mxu0
    %v454 = vadd.f32 0.0, %v453
    %v455 = vpop.f32.mrb[0].mxu0
    %v456 = vadd.f32 0.0, %v455
    %457 = vdwg.mxu0
    %v458 = vmul.f32 %v312, %v454
    %v459 = vmul.f32 %v314, %v456
    %v460 = vld [vmem:[%s2] sm:$0xff]
    %v461 = vld [vmem:[%s2 + $0x8] sm:$0xff]
    %v462 = vld [vmem:[%s2 + $0x10] sm:$0xff]
    %v463 = vld [vmem:[%s2 + $0x18] sm:$0xff]
    %v464 = vld [vmem:[%s2 + $0x20] sm:$0xff]
    %v465 = vld [vmem:[%s2 + $0x28] sm:$0xff]
    %v466 = vld [vmem:[%s2 + $0x30] sm:$0xff]
    %v467 = vld [vmem:[%s2 + $0x38] sm:$0xff]
    %v468 = vld [vmem:[%s2 + $0x40] sm:$0xff]
    %v469 = vld [vmem:[%s2 + $0x48] sm:$0xff]
    %v470 = vld [vmem:[%s2 + $0x50] sm:$0xff]
    %v471 = vld [vmem:[%s2 + $0x58] sm:$0xff]
    %v472 = vld [vmem:[%s2 + $0x60] sm:$0xff]
    %v473 = vld [vmem:[%s2 + $0x68] sm:$0xff]
    %v474 = vld [vmem:[%s2 + $0x70] sm:$0xff]
    %v475 = vld [vmem:[%s2 + $0x78] sm:$0xff]
    %v476 = vld [vmem:[%s2 + $0x80] sm:$0xff]
    %v477 = vld [vmem:[%s2 + $0x88] sm:$0xff]
    %v478 = vld [vmem:[%s2 + $0x90] sm:$0xff]
    %v479 = vld [vmem:[%s2 + $0x98] sm:$0xff]
    %v480 = vld [vmem:[%s2 + $0xa0] sm:$0xff]
    %v481 = vld [vmem:[%s2 + $0xa8] sm:$0xff]
    %v482 = vld [vmem:[%s2 + $0xb0] sm:$0xff]
    %v483 = vld [vmem:[%s2 + $0xb8] sm:$0xff]
    %v484 = vld [vmem:[%s2 + $0xc0] sm:$0xff]
    %v485 = vld [vmem:[%s2 + $0xc8] sm:$0xff]
    %v486 = vld [vmem:[%s2 + $0xd0] sm:$0xff]
    %v487 = vld [vmem:[%s2 + $0xd8] sm:$0xff]
    %v488 = vld [vmem:[%s2 + $0xe0] sm:$0xff]
    %v489 = vld [vmem:[%s2 + $0xe8] sm:$0xff]
    %v490 = vld [vmem:[%s2 + $0xf0] sm:$0xff]
    %v491 = vld [vmem:[%s2 + $0xf8] sm:$0xff]
    %492 = vmatprep.subr.mxu0 0.0
    %493 = vmatpush1.msra.mxu0 %v460
    %494 = vmatprep.subr.mxu0 0.0
    %495 = vmatpush1.msra.mxu0 %v461
    %496 = vmatprep.subr.mxu0 0.0
    %497 = vmatpush1.msra.mxu0 %v462
    %498 = vmatprep.subr.mxu0 0.0
    %499 = vmatpush1.msra.mxu0 %v463
    %500 = vmatprep.subr.mxu0 0.0
    %501 = vmatpush1.msra.mxu0 %v464
    %502 = vmatprep.subr.mxu0 0.0
    %503 = vmatpush1.msra.mxu0 %v465
    %504 = vmatprep.subr.mxu0 0.0
    %505 = vmatpush1.msra.mxu0 %v466
    %506 = vmatprep.subr.mxu0 0.0
    %507 = vmatpush1.msra.mxu0 %v467
    %508 = vmatprep.subr.mxu0 0.0
    %509 = vmatpush1.msra.mxu0 %v468
    %510 = vmatprep.subr.mxu0 0.0
    %511 = vmatpush1.msra.mxu0 %v469
    %512 = vmatprep.subr.mxu0 0.0
    %513 = vmatpush1.msra.mxu0 %v470
    %514 = vmatprep.subr.mxu0 0.0
    %515 = vmatpush1.msra.mxu0 %v471
    %516 = vmatprep.subr.mxu0 0.0
    %517 = vmatpush1.msra.mxu0 %v472
    %518 = vmatprep.subr.mxu0 0.0
    %519 = vmatpush1.msra.mxu0 %v473
    %520 = vmatprep.subr.mxu0 0.0
    %521 = vmatpush1.msra.mxu0 %v474
    %522 = vmatprep.subr.mxu0 0.0
    %523 = vmatpush1.msra.mxu0 %v475
    %524 = vmatprep.subr.mxu0 0.0
    %525 = vmatpush1.msra.mxu0 %v476
    %526 = vmatprep.subr.mxu0 0.0
    %527 = vmatpush1.msra.mxu0 %v477
    %528 = vmatprep.subr.mxu0 0.0
    %529 = vmatpush1.msra.mxu0 %v478
    %530 = vmatprep.subr.mxu0 0.0
    %531 = vmatpush1.msra.mxu0 %v479
    %532 = vmatprep.subr.mxu0 0.0
    %533 = vmatpush1.msra.mxu0 %v480
    %534 = vmatprep.subr.mxu0 0.0
    %535 = vmatpush1.msra.mxu0 %v481
    %536 = vmatprep.subr.mxu0 0.0
    %537 = vmatpush1.msra.mxu0 %v482
    %538 = vmatprep.subr.mxu0 0.0
    %539 = vmatpush1.msra.mxu0 %v483
    %540 = vmatprep.subr.mxu0 0.0
    %541 = vmatpush1.msra.mxu0 %v484
    %542 = vmatprep.subr.mxu0 0.0
    %543 = vmatpush1.msra.mxu0 %v485
    %544 = vmatprep.subr.mxu0 0.0
    %545 = vmatpush1.msra.mxu0 %v486
    %546 = vmatprep.subr.mxu0 0.0
    %547 = vmatpush1.msra.mxu0 %v487
    %548 = vmatprep.subr.mxu0 0.0
    %549 = vmatpush1.msra.mxu0 %v488
    %550 = vmatprep.subr.mxu0 0.0
    %551 = vmatpush1.msra.mxu0 %v489
    %552 = vmatprep.subr.mxu0 0.0
    %553 = vmatpush1.msra.mxu0 %v490
    %554 = vmatprep.subr.mxu0 0.0
    %555 = vmatpush1.msra.mxu0 %v491
    %556 = vmatprep.mubr.f32.mxu0 %v459
    %557 = vmatmul.mubr.f32.gmra.mrb[0].mxu0 %v458
    %v558 = vpop.f32.mrb[0].mxu0
    %v559 = vadd.f32 0.0, %v558
    %v560 = vpop.f32.mrb[0].mxu0
    %561 = vdwg.mxu0
    %vm562 = vcmask 254976
    %v563 = vsel %vm562, %v559, -inf
    %564 = vmax.xlane.f32.xlu0 %v563
    %v565 = vpop.xlane.xlu0 %564
    %v566 = vsub.f32 %v559, %v565
    %v567 = vmul.f32 %v566, 1.442695
    %v568 = vpow.pop %v567
    %v569 = vld [vmem:[%s3] sm:$0xff]
    %v570 = vld [vmem:[%s3 + $0x8] sm:$0xff]
    %v571 = vld [vmem:[%s3 + $0x10] sm:$0xff]
    %v572 = vld [vmem:[%s3 + $0x18] sm:$0xff]
    %vm573 = vcmask 261120
    %v575 = vsel %vm573, %v568, 0
    %577 = vmatprep.subr.mxu0 0.0
    %578 = vmatpush1.msra.mxu0 %v569
    %579 = vmatprep.subr.mxu0 0.0
    %580 = vmatpush1.msra.mxu0 %v570
    %581 = vmatprep.subr.mxu0 0.0
    %582 = vmatpush1.msra.mxu0 %v571
    %583 = vmatprep.subr.mxu0 0.0
    %584 = vmatpush1.msra.mxu0 %v572
    %585 = vmatprep.subr.mxu0 0.0
    %586 = vmatpush1.msra.mxu0 0.0
    %587 = vmatprep.subr.mxu0 0.0
    %588 = vmatpush1.msra.mxu0 0.0
    %589 = vmatprep.subr.mxu0 0.0
    %590 = vmatpush1.msra.mxu0 0.0
    %591 = vmatprep.subr.mxu0 0.0
    %592 = vmatpush1.msra.mxu0 0.0
    %593 = vmatprep.subr.mxu0 0.0
    %594 = vmatpush1.msra.mxu0 0.0
    %595 = vmatprep.subr.mxu0 0.0
    %596 = vmatpush1.msra.mxu0 0.0
    %597 = vmatprep.subr.mxu0 0.0
    %598 = vmatpush1.msra.mxu0 0.0
    %599 = vmatprep.subr.mxu0 0.0
    %600 = vmatpush1.msra.mxu0 0.0
    %601 = vmatprep.subr.mxu0 0.0
    %602 = vmatpush1.msra.mxu0 0.0
    %603 = vmatprep.subr.mxu0 0.0
    %604 = vmatpush1.msra.mxu0 0.0
    %605 = vmatprep.subr.mxu0 0.0
    %606 = vmatpush1.msra.mxu0 0.0
    %607 = vmatprep.subr.mxu0 0.0
    %608 = vmatpush1.msra.mxu0 0.0
    %609 = vmatprep.subr.mxu0 0.0
    %610 = vmatpush1.msra.mxu0 0.0
    %611 = vmatprep.subr.mxu0 0.0
    %612 = vmatpush1.msra.mxu0 0.0
    %613 = vmatprep.subr.mxu0 0.0
    %614 = vmatpush1.msra.mxu0 0.0
    %615 = vmatprep.subr.mxu0 0.0
    %616 = vmatpush1.msra.mxu0 0.0
    %617 = vmatprep.subr.mxu0 0.0
    %618 = vmatpush1.msra.mxu0 0.0
    %619 = vmatprep.subr.mxu0 0.0
    %620 = vmatpush1.msra.mxu0 0.0
    %621 = vmatprep.subr.mxu0 0.0
    %622 = vmatpush1.msra.mxu0 0.0
    %623 = vmatprep.subr.mxu0 0.0
    %624 = vmatpush1.msra.mxu0 0.0
    %625 = vmatprep.subr.mxu0 0.0
    %626 = vmatpush1.msra.mxu0 0.0
    %627 = vmatprep.subr.mxu0 0.0
    %628 = vmatpush1.msra.mxu0 0.0
    %629 = vmatprep.subr.mxu0 0.0
    %630 = vmatpush1.msra.mxu0 0.0
    %631 = vmatprep.subr.mxu0 0.0
    %632 = vmatpush1.msra.mxu0 0.0
    %633 = vmatprep.subr.mxu0 0.0
    %634 = vmatpush1.msra.mxu0 0.0
    %635 = vmatprep.subr.mxu0 0.0
    %636 = vmatpush1.msra.mxu0 0.0
    %637 = vmatprep.subr.mxu0 0.0
    %638 = vmatpush1.msra.mxu0 0.0
    %639 = vmatprep.subr.mxu0 0.0
    %640 = vmatpush1.msra.mxu0 0.0
    %641 = vmatprep.mubr.f32.mxu0 0.0
    %642 = vmatmul.mubr.f32.gmra.mrb[0].mxu0 %v575
    %v643 = vpop.f32.mrb[0].mxu0
    %v644 = vadd.f32 0.0, %v643
    %v645 = vpop.f32.mrb[0].mxu0
    %646 = vdwg.mxu0
    %v647 = vrcp.pop %v644
    %v648 = vmul.f32 %v568, %v647
    %v649 = vld [vmem:[%s4] sm:$0xff]
    %v650 = vld [vmem:[%s4 + $0x8] sm:$0xff]
    %v651 = vld [vmem:[%s4 + $0x10] sm:$0xff]
    %v652 = vld [vmem:[%s4 + $0x18] sm:$0xff]
    %v653 = vld [vmem:[%s4 + $0x20] sm:$0xff]
    %v654 = vld [vmem:[%s4 + $0x28] sm:$0xff]
    %v655 = vld [vmem:[%s4 + $0x30] sm:$0xff]
    %v656 = vld [vmem:[%s4 + $0x38] sm:$0xff]
    %v658 = vsel %vm573, %v648, 0
    %660 = vmatprep.subr.mxu0 %v650
    %661 = vmatpush1.msra.mxu0 %v649
    %662 = vmatprep.subr.mxu0 %v652
    %663 = vmatpush1.msra.mxu0 %v651
    %664 = vmatprep.subr.mxu0 %v654
    %665 = vmatpush1.msra.mxu0 %v653
    %666 = vmatprep.subr.mxu0 %v656
    %667 = vmatpush1.msra.mxu0 %v655
    %668 = vmatprep.subr.mxu0 0.0
    %669 = vmatpush1.msra.mxu0 0.0
    %670 = vmatprep.subr.mxu0 0.0
    %671 = vmatpush1.msra.mxu0 0.0
    %672 = vmatprep.subr.mxu0 0.0
    %673 = vmatpush1.msra.mxu0 0.0
    %674 = vmatprep.subr.mxu0 0.0
    %675 = vmatpush1.msra.mxu0 0.0
    %676 = vmatprep.subr.mxu0 0.0
    %677 = vmatpush1.msra.mxu0 0.0
    %678 = vmatprep.subr.mxu0 0.0
    %679 = vmatpush1.msra.mxu0 0.0
    %680 = vmatprep.subr.mxu0 0.0
    %681 = vmatpush1.msra.mxu0 0.0
    %682 = vmatprep.subr.mxu0 0.0
    %683 = vmatpush1.msra.mxu0 0.0
    %684 = vmatprep.subr.mxu0 0.0
    %685 = vmatpush1.msra.mxu0 0.0
    %686 = vmatprep.subr.mxu0 0.0
    %687 = vmatpush1.msra.mxu0 0.0
    %688 = vmatprep.subr.mxu0 0.0
    %689 = vmatpush1.msra.mxu0 0.0
    %690 = vmatprep.subr.mxu0 0.0
    %691 = vmatpush1.msra.mxu0 0.0
    %692 = vmatprep.subr.mxu0 0.0
    %693 = vmatpush1.msra.mxu0 0.0
    %694 = vmatprep.subr.mxu0 0.0
    %695 = vmatpush1.msra.mxu0 0.0
    %696 = vmatprep.subr.mxu0 0.0
    %697 = vmatpush1.msra.mxu0 0.0
    %698 = vmatprep.subr.mxu0 0.0
    %699 = vmatpush1.msra.mxu0 0.0
    %700 = vmatprep.subr.mxu0 0.0
    %701 = vmatpush1.msra.mxu0 0.0
    %702 = vmatprep.subr.mxu0 0.0
    %703 = vmatpush1.msra.mxu0 0.0
    %704 = vmatprep.subr.mxu0 0.0
    %705 = vmatpush1.msra.mxu0 0.0
    %706 = vmatprep.subr.mxu0 0.0
    %707 = vmatpush1.msra.mxu0 0.0
    %708 = vmatprep.subr.mxu0 0.0
    %709 = vmatpush1.msra.mxu0 0.0
    %710 = vmatprep.subr.mxu0 0.0
    %711 = vmatpush1.msra.mxu0 0.0
    %712 = vmatprep.subr.mxu0 0.0
    %713 = vmatpush1.msra.mxu0 0.0
    %714 = vmatprep.subr.mxu0 0.0
    %715 = vmatpush1.msra.mxu0 0.0
    %716 = vmatprep.subr.mxu0 0.0
    %717 = vmatpush1.msra.mxu0 0.0
    %718 = vmatprep.subr.mxu0 0.0
    %719 = vmatpush1.msra.mxu0 0.0
    %720 = vmatprep.subr.mxu0 0.0
    %721 = vmatpush1.msra.mxu0 0.0
    %722 = vmatprep.subr.mxu0 0.0
    %723 = vmatpush1.msra.mxu0 0.0
    %724 = vmatprep.mubr.f32.mxu0 0.0
    %725 = vmatmul.mubr.f32.gmra.mrb[0].mxu0 %v658
    %v726 = vpop.f32.mrb[0].mxu0
    %v727 = vadd.f32 0.0, %v726
    %v728 = vpop.f32.mrb[0].mxu0
    %v729 = vadd.f32 0.0, %v728
    %730 = vdwg.mxu0
    %v731 = vmul.f32 %v727, %v383
    %v732 = vmul.f32 %v729, %v385
    %v733 = vld [vmem:[%s5] sm:$0xff]
    %v734 = vld [vmem:[%s5 + $0x8] sm:$0xff]
    %v735 = vld [vmem:[%s5 + $0x10] sm:$0xff]
    %v736 = vld [vmem:[%s5 + $0x18] sm:$0xff]
    %v737 = vld [vmem:[%s5 + $0x20] sm:$0xff]
    %v738 = vld [vmem:[%s5 + $0x28] sm:$0xff]
    %v739 = vld [vmem:[%s5 + $0x30] sm:$0xff]
    %v740 = vld [vmem:[%s5 + $0x38] sm:$0xff]
    %v741 = vld [vmem:[%s5 + $0x40] sm:$0xff]
    %v742 = vld [vmem:[%s5 + $0x48] sm:$0xff]
    %v743 = vld [vmem:[%s5 + $0x50] sm:$0xff]
    %v744 = vld [vmem:[%s5 + $0x58] sm:$0xff]
    %v745 = vld [vmem:[%s5 + $0x60] sm:$0xff]
    %v746 = vld [vmem:[%s5 + $0x68] sm:$0xff]
    %v747 = vld [vmem:[%s5 + $0x70] sm:$0xff]
    %v748 = vld [vmem:[%s5 + $0x78] sm:$0xff]
    %v749 = vld [vmem:[%s5 + $0x80] sm:$0xff]
    %v750 = vld [vmem:[%s5 + $0x88] sm:$0xff]
    %v751 = vld [vmem:[%s5 + $0x90] sm:$0xff]
    %v752 = vld [vmem:[%s5 + $0x98] sm:$0xff]
    %v753 = vld [vmem:[%s5 + $0xa0] sm:$0xff]
    %v754 = vld [vmem:[%s5 + $0xa8] sm:$0xff]
    %v755 = vld [vmem:[%s5 + $0xb0] sm:$0xff]
    %v756 = vld [vmem:[%s5 + $0xb8] sm:$0xff]
    %v757 = vld [vmem:[%s5 + $0xc0] sm:$0xff]
    %v758 = vld [vmem:[%s5 + $0xc8] sm:$0xff]
    %v759 = vld [vmem:[%s5 + $0xd0] sm:$0xff]
    %v760 = vld [vmem:[%s5 + $0xd8] sm:$0xff]
    %v761 = vld [vmem:[%s5 + $0xe0] sm:$0xff]
    %v762 = vld [vmem:[%s5 + $0xe8] sm:$0xff]
    %v763 = vld [vmem:[%s5 + $0xf0] sm:$0xff]
    %v764 = vld [vmem:[%s5 + $0xf8] sm:$0xff]
    %v765 = vld [vmem:[%s6] sm:$0x1]
    %v767 = vlaneseq
    %v768 = vshrl.u32 %v767, 7
    %v769 = vsub.s32 0, %v768
    %v770 = vrot.slane %v765, %v769
    %772 = vmatprep.subr.mxu0 0.0
    %773 = vmatpush1.msra.mxu0 %v733
    %774 = vmatprep.subr.mxu0 0.0
    %775 = vmatpush1.msra.mxu0 %v734
    %776 = vmatprep.subr.mxu0 0.0
    %777 = vmatpush1.msra.mxu0 %v735
    %778 = vmatprep.subr.mxu0 0.0
    %779 = vmatpush1.msra.mxu0 %v736
    %780 = vmatprep.subr.mxu0 0.0
    %781 = vmatpush1.msra.mxu0 %v737
    %782 = vmatprep.subr.mxu0 0.0
    %783 = vmatpush1.msra.mxu0 %v738
    %784 = vmatprep.subr.mxu0 0.0
    %785 = vmatpush1.msra.mxu0 %v739
    %786 = vmatprep.subr.mxu0 0.0
    %787 = vmatpush1.msra.mxu0 %v740
    %788 = vmatprep.subr.mxu0 0.0
    %789 = vmatpush1.msra.mxu0 %v741
    %790 = vmatprep.subr.mxu0 0.0
    %791 = vmatpush1.msra.mxu0 %v742
    %792 = vmatprep.subr.mxu0 0.0
    %793 = vmatpush1.msra.mxu0 %v743
    %794 = vmatprep.subr.mxu0 0.0
    %795 = vmatpush1.msra.mxu0 %v744
    %796 = vmatprep.subr.mxu0 0.0
    %797 = vmatpush1.msra.mxu0 %v745
    %798 = vmatprep.subr.mxu0 0.0
    %799 = vmatpush1.msra.mxu0 %v746
    %800 = vmatprep.subr.mxu0 0.0
    %801 = vmatpush1.msra.mxu0 %v747
    %802 = vmatprep.subr.mxu0 0.0
    %803 = vmatpush1.msra.mxu0 %v748
    %804 = vmatprep.subr.mxu0 0.0
    %805 = vmatpush1.msra.mxu0 %v749
    %806 = vmatprep.subr.mxu0 0.0
    %807 = vmatpush1.msra.mxu0 %v750
    %808 = vmatprep.subr.mxu0 0.0
    %809 = vmatpush1.msra.mxu0 %v751
    %810 = vmatprep.subr.mxu0 0.0
    %811 = vmatpush1.msra.mxu0 %v752
    %812 = vmatprep.subr.mxu0 0.0
    %813 = vmatpush1.msra.mxu0 %v753
    %814 = vmatprep.subr.mxu0 0.0
    %815 = vmatpush1.msra.mxu0 %v754
    %816 = vmatprep.subr.mxu0 0.0
    %817 = vmatpush1.msra.mxu0 %v755
    %818 = vmatprep.subr.mxu0 0.0
    %819 = vmatpush1.msra.mxu0 %v756
    %820 = vmatprep.subr.mxu0 0.0
    %821 = vmatpush1.msra.mxu0 %v757
    %822 = vmatprep.subr.mxu0 0.0
    %823 = vmatpush1.msra.mxu0 %v758
    %824 = vmatprep.subr.mxu0 0.0
    %825 = vmatpush1.msra.mxu0 %v759
    %826 = vmatprep.subr.mxu0 0.0
    %827 = vmatpush1.msra.mxu0 %v760
    %828 = vmatprep.subr.mxu0 0.0
    %829 = vmatpush1.msra.mxu0 %v761
    %830 = vmatprep.subr.mxu0 0.0
    %831 = vmatpush1.msra.mxu0 %v762
    %832 = vmatprep.subr.mxu0 0.0
    %833 = vmatpush1.msra.mxu0 %v763
    %834 = vmatprep.subr.mxu0 0.0
    %835 = vmatpush1.msra.mxu0 %v764
    %836 = vmatprep.mubr.f32.mxu0 %v732
    %837 = vmatmul.mubr.f32.gmra.mrb[0].mxu0 %v731
    %v838 = vpop.f32.mrb[0].mxu0
    %v839 = vadd.f32 %v770, %v838
    %v840 = vpop.f32.mrb[0].mxu0
    %841 = vdwg.mxu0
    %842 = vst.msk [vmem:[#allocation5] sm:$0x3] %vm562, %v839
    // Predicated region
    $region34: #{tpu_custom_call.1} parent=1 // pred_check
      _
    $region35: #{tpu_custom_call.1} parent=1 // pred_check_branch
      %844 = sbr.rel (0) target = $region37
    $region36: #{tpu_custom_call.1} parent=1 // pred_region
      %s846 = ssub.s32 32, 32
      %847 = vsyncadd [#allocation4], %s846
      %s849 = sshll.u32 [#allocation5], 4
      %s850 = int_to_ptr.vmem [resolvable:$true] %s849
      %852 = dma.vmem_to_hbm [thread:$0]  %s850, 32, %s7, [#allocation4]
    $region37: #{tpu_custom_call.1} parent=1 // pred_fallthru
      _
    // Predicated region
    $region38: #{tpu_custom_call.1} parent=1 // pred_check
      _
    $region39: #{tpu_custom_call.1} parent=1 // pred_check_branch
      %854 = sbr.rel (0) target = $region41
    $region40: #{tpu_custom_call.1} parent=1 // pred_region
      %855 = dma.done [#allocation4], 32
    $region41: #{tpu_custom_call.1} parent=1 // pred_fallthru
      _
    %856 = vsyncpa [#allocation3], 1
    %857 = vsyncpa [#allocation4], 1

</llo_original>
